<compile_context>
chip_gen: v5e
topology: v5e:2x2
jax: 0.10.0
libtpu: 0.0.40
codegen_flags: <defaults>
</compile_context>

<pallas_src>
import functools
import math

import jax
import jax.numpy as jnp
from jax.experimental import pallas as pl
from jax.experimental.pallas import tpu as pltpu


def _round_up(x, m):
    return (x + m - 1) // m * m


# 48 MiB: headroom under v7x's 64 MiB physical VMEM, far above what the
# double-buffered tiles below need on any generation.
_VMEM_LIMIT_BYTES = 48 * 1024 * 1024
_FUSED_VMEM_BUDGET = 20 * 1024 * 1024   # conservative budget for the fused path


# ---------------------------------------------------------------------------
# Fused kernel (small graphs): out = tanh(adj @ tanh(x @ W)) + bias
# ---------------------------------------------------------------------------
def _gcn_fused_kernel(x_ref, w_ref, adj_ref, b_ref, o_ref):
    h = jnp.tanh(
        jnp.dot(x_ref[...], w_ref[...], preferred_element_type=jnp.float32)
    ).astype(adj_ref.dtype)
    acc = jnp.dot(adj_ref[...], h, preferred_element_type=jnp.float32)
    o_ref[...] = (jnp.tanh(acc) + b_ref[...]).astype(o_ref.dtype)


# ---------------------------------------------------------------------------
# Stage 1 (large graphs): h = tanh(X @ W)   (row-tiled; W kept whole, H small)
# ---------------------------------------------------------------------------
def _xw_tanh_kernel(x_ref, w_ref, h_ref):
    acc = jnp.dot(x_ref[...], w_ref[...], preferred_element_type=jnp.float32)
    h_ref[...] = jnp.tanh(acc).astype(h_ref.dtype)


# ---------------------------------------------------------------------------
# Stage 2 (large graphs): out = tanh(adj @ h) + bias   ((row, K)-tiled)
# ---------------------------------------------------------------------------
def _adj_tanh_bias_kernel(adj_ref, h_ref, b_ref, o_ref, acc_ref):
    k = pl.program_id(1)

    @pl.when(k == 0)
    def _():
        acc_ref[...] = jnp.zeros_like(acc_ref)

    acc_ref[...] += jnp.dot(
        adj_ref[...], h_ref[...], preferred_element_type=jnp.float32
    )

    @pl.when(k == pl.num_programs(1) - 1)
    def _():
        o_ref[...] = (jnp.tanh(acc_ref[...]) + b_ref[...]).astype(o_ref.dtype)


@functools.partial(jax.jit, static_argnames=("matmul_dtype",))
def gcn_forward(inputs, adj, weight, bias, *, matmul_dtype=None):
    """inputs: [N, H], adj: [N, N] (dense), weight: [H, H], bias: [H] -> [N, H].

    matmul_dtype: optional operand dtype for the MXU (e.g. jnp.bfloat16 on
    v6e/v7x).  Accumulation and the tanh/bias epilogue always stay float32.
    """
    n, hdim = inputs.shape
    assert adj.shape == (n, n)
    assert weight.shape == (hdim, hdim)
    assert bias.shape == (hdim,)

    out_dtype = inputs.dtype
    mm_dtype = out_dtype if matmul_dtype is None else matmul_dtype
    itemsize = jnp.dtype(mm_dtype).itemsize

    h_pad = _round_up(hdim, 128)          # lane-dense feature axis

    # ---- choose fused vs. two-stage tiled path (static shape decision) -----
    n_pad_small = _round_up(n, 128)
    fused_vmem = (
        itemsize * 2 * (n_pad_small * n_pad_small     # adj (double-buffered)
                        + n_pad_small * h_pad         # x
                        + h_pad * h_pad)              # W
        + 4 * 2 * (n_pad_small * h_pad + h_pad)       # out + bias
    )
    use_fused = (n_pad_small <= 512) and (fused_vmem <= _FUSED_VMEM_BUDGET)

    def pad2d(a, rows, cols, dt):
        return jnp.zeros((rows, cols), dt).at[: a.shape[0], : a.shape[1]].set(
            a.astype(dt))

    b_row = bias.astype(jnp.float32)[None, :]

    if use_fused:
        n_pad = n_pad_small
        x_p = pad2d(inputs, n_pad, h_pad, mm_dtype)
        w_p = pad2d(weight, h_pad, h_pad, mm_dtype)
        a_p = pad2d(adj, n_pad, n_pad, mm_dtype)
        b_p = pad2d(b_row, 1, h_pad, jnp.float32)

        cost = pl.CostEstimate(
            flops=2 * n_pad * h_pad * h_pad + 2 * n_pad * n_pad * h_pad,
            transcendentals=2 * n_pad * h_pad,
            bytes_accessed=(itemsize * (n_pad * h_pad + h_pad * h_pad
                                        + n_pad * n_pad)
                            + 4 * (h_pad + n_pad * h_pad)),
        )
        out_p = pl.pallas_call(
            _gcn_fused_kernel,
            out_shape=jax.ShapeDtypeStruct((n_pad, h_pad), out_dtype),
            grid_spec=pltpu.PrefetchScalarGridSpec(
                num_scalar_prefetch=0,
                grid=(1,),
                in_specs=[
                    pl.BlockSpec((n_pad, h_pad), lambda i: (0, 0)),   # X
                    pl.BlockSpec((h_pad, h_pad), lambda i: (0, 0)),   # W
                    pl.BlockSpec((n_pad, n_pad), lambda i: (0, 0)),   # adj
                    pl.BlockSpec((1, h_pad), lambda i: (0, 0)),       # bias
                ],
                out_specs=pl.BlockSpec((n_pad, h_pad), lambda i: (0, 0)),
            ),
            compiler_params=pltpu.CompilerParams(
                dimension_semantics=("arbitrary",),
                vmem_limit_bytes=_VMEM_LIMIT_BYTES,
            ),
            cost_estimate=cost,
        )(x_p, w_p, a_p, b_p)
        return out_p[:n, :hdim]

    # ---- large-graph path: two pipelined kernels ----------------------------
    n_pad = _round_up(n, 512)
    tm = 512                      # output-row tile (sublane-aligned, lane-dense out)
    tk = 512                      # reduction tile over the node axis

    x_p = pad2d(inputs, n_pad, h_pad, mm_dtype)
    w_p = pad2d(weight, h_pad, h_pad, mm_dtype)
    a_p = pad2d(adj, n_pad, n_pad, mm_dtype)
    b_p = pad2d(b_row, 1, h_pad, jnp.float32)

    # Stage 1: h = tanh(X @ W), computed once.  W is held whole in VMEM
    # (GCN hidden dims are small; no K-tiling needed).
    cost1 = pl.CostEstimate(
        flops=2 * n_pad * h_pad * h_pad,
        transcendentals=n_pad * h_pad,
        bytes_accessed=itemsize * (2 * n_pad * h_pad + h_pad * h_pad),
    )
    h = pl.pallas_call(
        _xw_tanh_kernel,
        out_shape=jax.ShapeDtypeStruct((n_pad, h_pad), mm_dtype),
        grid_spec=pltpu.PrefetchScalarGridSpec(
            num_scalar_prefetch=0,
            grid=(n_pad // tm,),
            in_specs=[
                pl.BlockSpec((tm, h_pad), lambda i: (i, 0)),      # X row tile
                pl.BlockSpec((h_pad, h_pad), lambda i: (0, 0)),   # W (whole)
            ],
            out_specs=pl.BlockSpec((tm, h_pad), lambda i: (i, 0)),
        ),
        compiler_params=pltpu.CompilerParams(
            dimension_semantics=("parallel",),
            vmem_limit_bytes=_VMEM_LIMIT_BYTES,
        ),
        cost_estimate=cost1,
    )(x_p, w_p)

    # Stage 2: out = tanh(adj @ h) + bias, tiled (rows, K); K (reduction) last.
    cost2 = pl.CostEstimate(
        flops=2 * n_pad * n_pad * h_pad,
        transcendentals=n_pad * h_pad,
        bytes_accessed=(itemsize * (n_pad * n_pad + n_pad * h_pad)
                        + 4 * (n_pad * h_pad + h_pad)),
    )
    out_p = pl.pallas_call(
        _adj_tanh_bias_kernel,
        out_shape=jax.ShapeDtypeStruct((n_pad, h_pad), out_dtype),
        grid_spec=pltpu.PrefetchScalarGridSpec(
            num_scalar_prefetch=0,
            grid=(n_pad // tm, n_pad // tk),          # reduction axis last
            in_specs=[
                pl.BlockSpec((tm, tk), lambda i, k: (i, k)),      # adj tile
                pl.BlockSpec((tk, h_pad), lambda i, k: (k, 0)),   # h slab
                pl.BlockSpec((1, h_pad), lambda i, k: (0, 0)),    # bias
            ],
            out_specs=pl.BlockSpec((tm, h_pad), lambda i, k: (i, 0)),
            scratch_shapes=[pltpu.VMEM((tm, h_pad), jnp.float32)],
        ),
        compiler_params=pltpu.CompilerParams(
            dimension_semantics=("parallel", "arbitrary"),
            vmem_limit_bytes=_VMEM_LIMIT_BYTES,
        ),
        cost_estimate=cost2,
    )(a_p, h, b_p)

    return out_p[:n, :hdim]


def gcn_reference(inputs, adj, weight, bias):
    h = jnp.tanh(jnp.dot(inputs, weight, precision=jax.lax.Precision.HIGHEST))
    o = jnp.tanh(jnp.dot(adj, h, precision=jax.lax.Precision.HIGHEST))
    return o + bias[None, :]


if __name__ == "__main__":
    # --- small shapes matching the module (hidden_dim=32, 8 graph nodes) ----
    N = 8
    HIDDEN = 32

    key = jax.random.PRNGKey(0)
    k_x, k_adj, k_w, k_b = jax.random.split(key, 4)

    # Deterministic init matching reset_parameters(): uniform(-stdv, stdv)
    stdv = 1.0 / math.sqrt(HIDDEN)
    weight = jax.random.uniform(
        k_w, (HIDDEN, HIDDEN), minval=-stdv, maxval=stdv, dtype=jnp.float32)
    bias = jax.random.uniform(
        k_b, (HIDDEN,), minval=-stdv, maxval=stdv, dtype=jnp.float32)

    inputs = jax.random.normal(k_x, (N, HIDDEN), dtype=jnp.float32)
    adj_raw = jax.random.uniform(k_adj, (N, N), dtype=jnp.float32)
    adj = adj_raw / jnp.sum(adj_raw, axis=-1, keepdims=True)   # row-normalized

    out = jax.block_until_ready(gcn_forward(inputs, adj, weight, bias))
    ref = gcn_reference(inputs, adj, weight, bias)
    assert out.shape == (N, HIDDEN)
    assert jnp.allclose(out, ref, atol=1e-5, rtol=1e-5), "small/fused mismatch"

    # --- larger, non-aligned case to exercise the tiled (rows, K) path ------
    N2, H2 = 600, 48    # pads to n_pad=1024 (tm=tk=512), h_pad=128
    key2 = jax.random.PRNGKey(1)
    k_x2, k_adj2, k_w2, k_b2 = jax.random.split(key2, 4)
    stdv2 = 1.0 / math.sqrt(H2)
    w2 = jax.random.uniform(k_w2, (H2, H2), minval=-stdv2, maxval=stdv2,
                            dtype=jnp.float32)
    b2 = jax.random.uniform(k_b2, (H2,), minval=-stdv2, maxval=stdv2,
                            dtype=jnp.float32)
    x2 = jax.random.normal(k_x2, (N2, H2), dtype=jnp.float32)
    a2_raw = jax.random.uniform(k_adj2, (N2, N2), dtype=jnp.float32)
    a2 = a2_raw / jnp.sum(a2_raw, axis=-1, keepdims=True)

    out2 = jax.block_until_ready(gcn_forward(x2, a2, w2, b2))
    ref2 = gcn_reference(x2, a2, w2, b2)
    assert out2.shape == (N2, H2)
    assert jnp.allclose(out2, ref2, atol=1e-4, rtol=1e-4), "tiled-case mismatch"

    # TODO(synk): torch.spmm sparsity is treated as a dense adjacency matmul;
    # a true sparse gather/scatter kernel would need manual DMA gathers.
    print("KERNEL_OK")
</pallas_src>

<mosaic_0001>
module attributes {stable_mosaic.version = 11 : i64} {
  func.func @_gcn_fused_kernel(%arg0: i32, %arg1: memref<128x128xf32, #tpu.memory_space<vmem>>, %arg2: memref<128x128xf32, #tpu.memory_space<vmem>>, %arg3: memref<128x128xf32, #tpu.memory_space<vmem>>, %arg4: memref<1x128xf32, #tpu.memory_space<vmem>>, %arg5: memref<128x128xf32, #tpu.memory_space<vmem>>) attributes {dimension_semantics = [#tpu.dimension_semantics<arbitrary>], iteration_bounds = array<i64: 1>, scalar_prefetch = 0 : i64, scratch_operands = 0 : i64, tpu.core_type = #tpu.core_type<tc>, window_params = [{pipeline_mode = #tpu.pipeline_mode<synchronous>, transform_indices = @transform_0, window_bounds = array<i64: 128, 128>}, {pipeline_mode = #tpu.pipeline_mode<synchronous>, transform_indices = @transform_1, window_bounds = array<i64: 128, 128>}, {pipeline_mode = #tpu.pipeline_mode<synchronous>, transform_indices = @transform_2, window_bounds = array<i64: 128, 128>}, {pipeline_mode = #tpu.pipeline_mode<synchronous>, transform_indices = @transform_3, window_bounds = array<i64: 1, 128>}, {pipeline_mode = #tpu.pipeline_mode<synchronous>, transform_indices = @transform_4, window_bounds = array<i64: 128, 128>}]} {
    %c0 = arith.constant 0 : index
    %c0_0 = arith.constant 0 : index
    %0 = vector.load %arg1[%c0, %c0_0] : memref<128x128xf32, #tpu.memory_space<vmem>>, vector<128x128xf32>
    %c0_1 = arith.constant 0 : index
    %c0_2 = arith.constant 0 : index
    %1 = vector.load %arg2[%c0_1, %c0_2] : memref<128x128xf32, #tpu.memory_space<vmem>>, vector<128x128xf32>
    %cst = arith.constant dense<0.000000e+00> : vector<128x128xf32>
    %2 = tpu.matmul %0, %1, %cst {dimension_numbers = #tpu.dot_dimension_numbers<[1], [0], [0], [1], [0, 0, 1, 1], [], []>} : vector<128x128xf32>, vector<128x128xf32>, vector<128x128xf32> -> vector<128x128xf32>
    %3 = math.tanh %2 : vector<128x128xf32>
    %c0_3 = arith.constant 0 : index
    %c0_4 = arith.constant 0 : index
    %4 = vector.load %arg3[%c0_3, %c0_4] : memref<128x128xf32, #tpu.memory_space<vmem>>, vector<128x128xf32>
    %cst_5 = arith.constant dense<0.000000e+00> : vector<128x128xf32>
    %5 = tpu.matmul %4, %3, %cst_5 {dimension_numbers = #tpu.dot_dimension_numbers<[1], [0], [0], [1], [0, 0, 1, 1], [], []>} : vector<128x128xf32>, vector<128x128xf32>, vector<128x128xf32> -> vector<128x128xf32>
    %6 = math.tanh %5 : vector<128x128xf32>
    %c0_6 = arith.constant 0 : index
    %c0_7 = arith.constant 0 : index
    %7 = vector.load %arg4[%c0_6, %c0_7] : memref<1x128xf32, #tpu.memory_space<vmem>>, vector<1x128xf32>
    %8 = vector.broadcast %7 : vector<1x128xf32> to vector<128x128xf32>
    %9 = arith.addf %6, %8 : vector<128x128xf32>
    %c0_8 = arith.constant 0 : index
    %c0_9 = arith.constant 0 : index
    %10 = vector.load %arg5[%c0_8, %c0_9] : memref<128x128xf32, #tpu.memory_space<vmem>>, vector<128x128xf32>
    tpu.vector_store %arg5[%c0_8, %c0_9], %9 {strides = array<i32>} : memref<128x128xf32, #tpu.memory_space<vmem>>, vector<128x128xf32>,
    return
  }
  func.func @transform_0(%arg0: i32) -> (i32, i32) {
    %c0_i32 = arith.constant 0 : i32
    %c0_i32_0 = arith.constant 0 : i32
    %c0_i32_1 = arith.constant 0 : i32
    return %c0_i32, %c0_i32_0 : i32, i32
  }
  func.func @transform_1(%arg0: i32) -> (i32, i32) {
    %c0_i32 = arith.constant 0 : i32
    %c0_i32_0 = arith.constant 0 : i32
    %c0_i32_1 = arith.constant 0 : i32
    return %c0_i32, %c0_i32_0 : i32, i32
  }
  func.func @transform_2(%arg0: i32) -> (i32, i32) {
    %c0_i32 = arith.constant 0 : i32
    %c0_i32_0 = arith.constant 0 : i32
    %c0_i32_1 = arith.constant 0 : i32
    return %c0_i32, %c0_i32_0 : i32, i32
  }
  func.func @transform_3(%arg0: i32) -> (i32, i32) {
    %c0_i32 = arith.constant 0 : i32
    %c0_i32_0 = arith.constant 0 : i32
    %c0_i32_1 = arith.constant 0 : i32
    return %c0_i32, %c0_i32_0 : i32, i32
  }
  func.func @transform_4(%arg0: i32) -> (i32, i32) {
    %c0_i32 = arith.constant 0 : i32
    %c0_i32_0 = arith.constant 0 : i32
    %c0_i32_1 = arith.constant 0 : i32
    return %c0_i32, %c0_i32_0 : i32, i32
  }
}

</mosaic_0001>

<llo_original>
// kernel: gcn_forward.1
$region0: #{gcn_forward.1}
  #allocation0 [shape = 'u32[]', space=smem, size = 0x4, offset = 0x4, fixed_abs, tag = 'smem constant byte address 0x4 - core index']
  #allocation1 [shape = 'u32[72,128]{1,0:T(1,128)}', space=vmem, size = 0x9000, scoped, tag = 'internal scratch']
  %s0 = inlined_call_operand.vmem [shape: f32[128,128], index: 0, kind: input, shape index: {}]
  %s1 = inlined_call_operand.vmem [shape: f32[128,128], index: 1, kind: input, shape index: {}]
  %s2 = inlined_call_operand.vmem [shape: f32[128,128], index: 2, kind: input, shape index: {}]
  %s3 = inlined_call_operand.vmem [shape: f32[1,128], index: 3, kind: input, shape index: {}]
  %s4 = inlined_call_operand.vmem [shape: f32[128,128], index: 4, kind: output, shape index: {}]
  %s5 = sld [smem:[#allocation0]]
  $region26: #{gcn_forward.1} parent=0
    _
  %s7 = ssub.s32 1, %s5
  %s8 = scalar_select 0, %s7, %s5
  // Predicated region
  $region2: #{gcn_forward.1} parent=0 // pred_check
    _
  $region3: #{gcn_forward.1} parent=0 // pred_check_branch
    %10 = sbr.rel (0) target = $region5
  $region4: #{gcn_forward.1} parent=0 // pred_region
    _
  $region5: #{gcn_forward.1} parent=0 // pred_fallthru
    _
  // Predicated region
  $region6: #{gcn_forward.1} parent=0 // pred_check
    _
  $region7: #{gcn_forward.1} parent=0 // pred_check_branch
    %12 = sbr.rel (0) target = $region9
  $region8: #{gcn_forward.1} parent=0 // pred_region
    _
  $region9: #{gcn_forward.1} parent=0 // pred_fallthru
    _
  // Predicated region
  $region10: #{gcn_forward.1} parent=0 // pred_check
    _
  $region11: #{gcn_forward.1} parent=0 // pred_check_branch
    %14 = sbr.rel (0) target = $region13
  $region12: #{gcn_forward.1} parent=0 // pred_region
    _
  $region13: #{gcn_forward.1} parent=0 // pred_fallthru
    _
  // Predicated region
  $region14: #{gcn_forward.1} parent=0 // pred_check
    _
  $region15: #{gcn_forward.1} parent=0 // pred_check_branch
    %16 = sbr.rel (0) target = $region17
  $region16: #{gcn_forward.1} parent=0 // pred_region
    _
  $region17: #{gcn_forward.1} parent=0 // pred_fallthru
    _
  %v17 = vld [vmem:[%s0] sm:$0xff]
  %v18 = vld [vmem:[%s0 + $0x8] sm:$0xff]
  %v19 = vld [vmem:[%s0 + $0x10] sm:$0xff]
  %v20 = vld [vmem:[%s0 + $0x18] sm:$0xff]
  %v21 = vld [vmem:[%s0 + $0x20] sm:$0xff]
  %v22 = vld [vmem:[%s0 + $0x28] sm:$0xff]
  %v23 = vld [vmem:[%s0 + $0x30] sm:$0xff]
  %v24 = vld [vmem:[%s0 + $0x38] sm:$0xff]
  %v25 = vld [vmem:[%s0 + $0x40] sm:$0xff]
  %v26 = vld [vmem:[%s0 + $0x48] sm:$0xff]
  %v27 = vld [vmem:[%s0 + $0x50] sm:$0xff]
  %v28 = vld [vmem:[%s0 + $0x58] sm:$0xff]
  %v29 = vld [vmem:[%s0 + $0x60] sm:$0xff]
  %v30 = vld [vmem:[%s0 + $0x68] sm:$0xff]
  %v31 = vld [vmem:[%s0 + $0x70] sm:$0xff]
  %v32 = vld [vmem:[%s0 + $0x78] sm:$0xff]
  %v33 = vld [vmem:[%s1] sm:$0xff]
  %v34 = vld [vmem:[%s1 + $0x8] sm:$0xff]
  %v35 = vld [vmem:[%s1 + $0x10] sm:$0xff]
  %v36 = vld [vmem:[%s1 + $0x18] sm:$0xff]
  %v37 = vld [vmem:[%s1 + $0x20] sm:$0xff]
  %v38 = vld [vmem:[%s1 + $0x28] sm:$0xff]
  %v39 = vld [vmem:[%s1 + $0x30] sm:$0xff]
  %v40 = vld [vmem:[%s1 + $0x38] sm:$0xff]
  %v41 = vld [vmem:[%s1 + $0x40] sm:$0xff]
  %v42 = vld [vmem:[%s1 + $0x48] sm:$0xff]
  %v43 = vld [vmem:[%s1 + $0x50] sm:$0xff]
  %v44 = vld [vmem:[%s1 + $0x58] sm:$0xff]
  %v45 = vld [vmem:[%s1 + $0x60] sm:$0xff]
  %v46 = vld [vmem:[%s1 + $0x68] sm:$0xff]
  %v47 = vld [vmem:[%s1 + $0x70] sm:$0xff]
  %v48 = vld [vmem:[%s1 + $0x78] sm:$0xff]
  %49 = vmatpush.msra.mxu0 %v48
  %50 = vmatpush.msra.mxu0 %v47
  %51 = vmatpush.msra.mxu0 %v46
  %52 = vmatpush.msra.mxu0 %v45
  %53 = vmatpush.msra.mxu0 %v44
  %54 = vmatpush.msra.mxu0 %v43
  %55 = vmatpush.msra.mxu0 %v42
  %56 = vmatpush.msra.mxu0 %v41
  %57 = vmatpush.msra.mxu0 %v40
  %58 = vmatpush.msra.mxu0 %v39
  %59 = vmatpush.msra.mxu0 %v38
  %60 = vmatpush.msra.mxu0 %v37
  %61 = vmatpush.msra.mxu0 %v36
  %62 = vmatpush.msra.mxu0 %v35
  %63 = vmatpush.msra.mxu0 %v34
  %64 = vmatpush.msra.mxu0 %v33
  %65 = vmatmul.f32.gmra.mxu0 %v17
  %v66 = vpop.f32.mrf.mxu0
  %v67 = vadd.f32 0.0, %v66
  %68 = vmatmul.f32.gmra.mxu0 %v18
  %v69 = vpop.f32.mrf.mxu0
  %v70 = vadd.f32 0.0, %v69
  %71 = vmatmul.f32.gmra.mxu0 %v19
  %v72 = vpop.f32.mrf.mxu0
  %v73 = vadd.f32 0.0, %v72
  %74 = vmatmul.f32.gmra.mxu0 %v20
  %v75 = vpop.f32.mrf.mxu0
  %v76 = vadd.f32 0.0, %v75
  %77 = vmatmul.f32.gmra.mxu0 %v21
  %v78 = vpop.f32.mrf.mxu0
  %v79 = vadd.f32 0.0, %v78
  %80 = vmatmul.f32.gmra.mxu0 %v22
  %v81 = vpop.f32.mrf.mxu0
  %v82 = vadd.f32 0.0, %v81
  %83 = vmatmul.f32.gmra.mxu0 %v23
  %v84 = vpop.f32.mrf.mxu0
  %v85 = vadd.f32 0.0, %v84
  %86 = vmatmul.f32.gmra.mxu0 %v24
  %v87 = vpop.f32.mrf.mxu0
  %v88 = vadd.f32 0.0, %v87
  %89 = vmatmul.f32.gmra.mxu0 %v25
  %v90 = vpop.f32.mrf.mxu0
  %v91 = vadd.f32 0.0, %v90
  %92 = vmatmul.f32.gmra.mxu0 %v26
  %v93 = vpop.f32.mrf.mxu0
  %v94 = vadd.f32 0.0, %v93
  %95 = vmatmul.f32.gmra.mxu0 %v27
  %v96 = vpop.f32.mrf.mxu0
  %v97 = vadd.f32 0.0, %v96
  %98 = vmatmul.f32.gmra.mxu0 %v28
  %v99 = vpop.f32.mrf.mxu0
  %v100 = vadd.f32 0.0, %v99
  %101 = vmatmul.f32.gmra.mxu0 %v29
  %v102 = vpop.f32.mrf.mxu0
  %v103 = vadd.f32 0.0, %v102
  %104 = vmatmul.f32.gmra.mxu0 %v30
  %v105 = vpop.f32.mrf.mxu0
  %v106 = vadd.f32 0.0, %v105
  %107 = vmatmul.f32.gmra.mxu0 %v31
  %v108 = vpop.f32.mrf.mxu0
  %v109 = vadd.f32 0.0, %v108
  %110 = vmatmul.f32.gmra.mxu0 %v32
  %v111 = vpop.f32.mrf.mxu0
  %v112 = vadd.f32 0.0, %v111
  %113 = vdwg.mxu0
  %v114 = vtanh.pop %v67
  %v115 = vtanh.pop %v70
  %v116 = vtanh.pop %v73
  %v117 = vtanh.pop %v76
  %v118 = vtanh.pop %v79
  %v119 = vtanh.pop %v82
  %v120 = vtanh.pop %v85
  %v121 = vtanh.pop %v88
  %v122 = vtanh.pop %v91
  %v123 = vtanh.pop %v94
  %v124 = vtanh.pop %v97
  %v125 = vtanh.pop %v100
  %v126 = vtanh.pop %v103
  %v127 = vtanh.pop %v106
  %v128 = vtanh.pop %v109
  %v129 = vtanh.pop %v112
  %v130 = vld [vmem:[%s2] sm:$0xff]
  %v131 = vld [vmem:[%s2 + $0x8] sm:$0xff]
  %v132 = vld [vmem:[%s2 + $0x10] sm:$0xff]
  %v133 = vld [vmem:[%s2 + $0x18] sm:$0xff]
  %v134 = vld [vmem:[%s2 + $0x20] sm:$0xff]
  %v135 = vld [vmem:[%s2 + $0x28] sm:$0xff]
  %v136 = vld [vmem:[%s2 + $0x30] sm:$0xff]
  %v137 = vld [vmem:[%s2 + $0x38] sm:$0xff]
  %v138 = vld [vmem:[%s2 + $0x40] sm:$0xff]
  %v139 = vld [vmem:[%s2 + $0x48] sm:$0xff]
  %v140 = vld [vmem:[%s2 + $0x50] sm:$0xff]
  %v141 = vld [vmem:[%s2 + $0x58] sm:$0xff]
  %v142 = vld [vmem:[%s2 + $0x60] sm:$0xff]
  %v143 = vld [vmem:[%s2 + $0x68] sm:$0xff]
  %v144 = vld [vmem:[%s2 + $0x70] sm:$0xff]
  %v145 = vld [vmem:[%s2 + $0x78] sm:$0xff]
  %146 = vmatpush.msra.mxu0 %v129
  %147 = vmatpush.msra.mxu0 %v128
  %148 = vmatpush.msra.mxu0 %v127
  %149 = vmatpush.msra.mxu0 %v126
  %150 = vmatpush.msra.mxu0 %v125
  %151 = vmatpush.msra.mxu0 %v124
  %152 = vmatpush.msra.mxu0 %v123
  %153 = vmatpush.msra.mxu0 %v122
  %154 = vmatpush.msra.mxu0 %v121
  %155 = vmatpush.msra.mxu0 %v120
  %156 = vmatpush.msra.mxu0 %v119
  %157 = vmatpush.msra.mxu0 %v118
  %158 = vmatpush.msra.mxu0 %v117
  %159 = vmatpush.msra.mxu0 %v116
  %160 = vmatpush.msra.mxu0 %v115
  %161 = vmatpush.msra.mxu0 %v114
  %162 = vmatmul.f32.gmra.mxu0 %v130
  %v163 = vpop.f32.mrf.mxu0
  %v164 = vadd.f32 0.0, %v163
  %165 = vmatmul.f32.gmra.mxu0 %v131
  %v166 = vpop.f32.mrf.mxu0
  %v167 = vadd.f32 0.0, %v166
  %168 = vmatmul.f32.gmra.mxu0 %v132
  %v169 = vpop.f32.mrf.mxu0
  %v170 = vadd.f32 0.0, %v169
  %171 = vmatmul.f32.gmra.mxu0 %v133
  %v172 = vpop.f32.mrf.mxu0
  %v173 = vadd.f32 0.0, %v172
  %174 = vmatmul.f32.gmra.mxu0 %v134
  %v175 = vpop.f32.mrf.mxu0
  %v176 = vadd.f32 0.0, %v175
  %177 = vmatmul.f32.gmra.mxu0 %v135
  %v178 = vpop.f32.mrf.mxu0
  %v179 = vadd.f32 0.0, %v178
  %180 = vmatmul.f32.gmra.mxu0 %v136
  %v181 = vpop.f32.mrf.mxu0
  %v182 = vadd.f32 0.0, %v181
  %183 = vmatmul.f32.gmra.mxu0 %v137
  %v184 = vpop.f32.mrf.mxu0
  %v185 = vadd.f32 0.0, %v184
  %186 = vmatmul.f32.gmra.mxu0 %v138
  %v187 = vpop.f32.mrf.mxu0
  %v188 = vadd.f32 0.0, %v187
  %189 = vmatmul.f32.gmra.mxu0 %v139
  %v190 = vpop.f32.mrf.mxu0
  %v191 = vadd.f32 0.0, %v190
  %192 = vmatmul.f32.gmra.mxu0 %v140
  %v193 = vpop.f32.mrf.mxu0
  %v194 = vadd.f32 0.0, %v193
  %195 = vmatmul.f32.gmra.mxu0 %v141
  %v196 = vpop.f32.mrf.mxu0
  %v197 = vadd.f32 0.0, %v196
  %198 = vmatmul.f32.gmra.mxu0 %v142
  %v199 = vpop.f32.mrf.mxu0
  %v200 = vadd.f32 0.0, %v199
  %201 = vmatmul.f32.gmra.mxu0 %v143
  %v202 = vpop.f32.mrf.mxu0
  %v203 = vadd.f32 0.0, %v202
  %204 = vmatmul.f32.gmra.mxu0 %v144
  %v205 = vpop.f32.mrf.mxu0
  %v206 = vadd.f32 0.0, %v205
  %207 = vmatmul.f32.gmra.mxu0 %v145
  %v208 = vpop.f32.mrf.mxu0
  %v209 = vadd.f32 0.0, %v208
  %210 = vdwg.mxu0
  %v211 = vtanh.pop %v164
  %v212 = vtanh.pop %v167
  %v213 = vtanh.pop %v170
  %v214 = vtanh.pop %v173
  %v215 = vtanh.pop %v176
  %v216 = vtanh.pop %v179
  %v217 = vtanh.pop %v182
  %v218 = vtanh.pop %v185
  %v219 = vtanh.pop %v188
  %v220 = vtanh.pop %v191
  %v221 = vtanh.pop %v194
  %v222 = vtanh.pop %v197
  %v223 = vtanh.pop %v200
  %v224 = vtanh.pop %v203
  %v225 = vtanh.pop %v206
  %v226 = vtanh.pop %v209
  %v227 = vld [vmem:[%s3] sm:$0x1]
  %v229 = vperm.slane %v227, 0
  %v231 = vadd.f32 %v211, %v229
  %v232 = vadd.f32 %v212, %v229
  %v233 = vadd.f32 %v213, %v229
  %v234 = vadd.f32 %v214, %v229
  %v235 = vadd.f32 %v215, %v229
  %v236 = vadd.f32 %v216, %v229
  %v237 = vadd.f32 %v217, %v229
  %v238 = vadd.f32 %v218, %v229
  %v239 = vadd.f32 %v219, %v229
  %v240 = vadd.f32 %v220, %v229
  %v241 = vadd.f32 %v221, %v229
  %v242 = vadd.f32 %v222, %v229
  %v243 = vadd.f32 %v223, %v229
  %v244 = vadd.f32 %v224, %v229
  %v245 = vadd.f32 %v225, %v229
  %v246 = vadd.f32 %v226, %v229
  %247 = vst [vmem:[%s4] sm:$0xff] %v231
  %248 = vst [vmem:[%s4 + $0x8] sm:$0xff] %v232
  %249 = vst [vmem:[%s4 + $0x10] sm:$0xff] %v233
  %250 = vst [vmem:[%s4 + $0x18] sm:$0xff] %v234
  %251 = vst [vmem:[%s4 + $0x20] sm:$0xff] %v235
  %252 = vst [vmem:[%s4 + $0x28] sm:$0xff] %v236
  %253 = vst [vmem:[%s4 + $0x30] sm:$0xff] %v237
  %254 = vst [vmem:[%s4 + $0x38] sm:$0xff] %v238
  %255 = vst [vmem:[%s4 + $0x40] sm:$0xff] %v239
  %256 = vst [vmem:[%s4 + $0x48] sm:$0xff] %v240
  %257 = vst [vmem:[%s4 + $0x50] sm:$0xff] %v241
  %258 = vst [vmem:[%s4 + $0x58] sm:$0xff] %v242
  %259 = vst [vmem:[%s4 + $0x60] sm:$0xff] %v243
  %260 = vst [vmem:[%s4 + $0x68] sm:$0xff] %v244
  %261 = vst [vmem:[%s4 + $0x70] sm:$0xff] %v245
  %262 = vst [vmem:[%s4 + $0x78] sm:$0xff] %v246
  // Predicated region
  $region18: #{gcn_forward.1} parent=0 // pred_check
    _
  $region19: #{gcn_forward.1} parent=0 // pred_check_branch
    %264 = sbr.rel (0) target = $region21
  $region20: #{gcn_forward.1} parent=0 // pred_region
    _
  $region21: #{gcn_forward.1} parent=0 // pred_fallthru
    _
  // Predicated region
  $region22: #{gcn_forward.1} parent=0 // pred_check
    _
  $region23: #{gcn_forward.1} parent=0 // pred_check_branch
    %266 = sbr.rel (0) target = $region25
  $region24: #{gcn_forward.1} parent=0 // pred_region
    _
  $region25: #{gcn_forward.1} parent=0 // pred_fallthru
    _

</llo_original>
